<compile_context>
chip_gen: v6e
topology: v6e:2x2x1
jax: 0.10.0
libtpu: 0.0.40
codegen_flags: <defaults>
</compile_context>

<pallas_src>
import jax
import jax.numpy as jnp
from jax.experimental import pallas as pl
from jax.experimental.pallas import tpu as pltpu  # noqa: F401  (TPU backend)

LANE = 128


# ------------------------------ small helpers --------------------------------

def _round_up(n, m):
    return ((n + m - 1) // m) * m


def _pad2d(x, rows, cols):
    r, c = x.shape
    return jnp.pad(x, ((0, rows - r), (0, cols - c)))


# ----------------------------- Pallas kernel ---------------------------------

def _fused_encoder_kernel(x_ref, adj_ref, wc_ref, out_ref):
    """Fused 3-layer GNN encoder; inter-layer activations never leave VMEM."""
    adj = adj_ref[...]

    def layer(f, k):
        # support = tanh(f @ Wc_k), Wc_k = (0.9*I + 0.1*W1_k) @ W_k (pre-combined)
        support = jnp.tanh(
            jnp.dot(f, wc_ref[k], preferred_element_type=jnp.float32))
        return jnp.dot(adj, support, preferred_element_type=jnp.float32)

    z = layer(x_ref[...], 0)
    z = layer(z, 1)
    z = layer(z, 2)
    out_ref[...] = z.astype(out_ref.dtype)


def _full_spec(shape):
    # Full-extent block: block_shape == array shape, single grid point.
    return pl.BlockSpec(shape, lambda: tuple(0 for _ in shape))


# --------------------------- one-time weight prep ----------------------------

def prepare_igae_encoder_params(params):
    """Fold residual + combine + pad + stack the per-layer weights ONCE.

    Returns a dict with:
      wc   : [3, D, D] f32 stacked combined weights, zero-padded to D=lane mult
      dims : (n_input, d1, d2, d3) true feature dims
      D    : padded uniform feature dim (multiple of 128)
    """
    n_input = params["gnn_1"]["weight1"].shape[0]
    d1 = params["gnn_1"]["weight"].shape[1]
    d2 = params["gnn_2"]["weight"].shape[1]
    d3 = params["gnn_3"]["weight"].shape[1]
    dims = (n_input, d1, d2, d3)
    D = max(_round_up(d, LANE) for d in dims)

    def combine(p):
        din = p["weight1"].shape[0]
        w1_eff = 0.9 * jnp.eye(din, dtype=jnp.float32) + 0.1 * p["weight1"]
        # High precision for the one-time combine so kernel accuracy matches
        # the reference formulation closely.
        wc = jnp.dot(w1_eff, p["weight"],
                     precision=jax.lax.Precision.HIGHEST)
        return _pad2d(wc.astype(jnp.float32), D, D)

    wc_stack = jnp.stack([combine(params["gnn_1"]),
                          combine(params["gnn_2"]),
                          combine(params["gnn_3"])])
    wc_stack = jax.device_put(wc_stack)  # materialize once, reuse every call
    return {"wc": wc_stack, "dims": dims, "D": D}


# -------------------------------- forward ------------------------------------

def igae_encoder_forward(prepared, x, adj):
    n, n_input = x.shape
    D = prepared["D"]
    din, d1, d2, d3 = prepared["dims"]
    assert n_input == din

    # Lane-dense zero padding of the feature dim. Padded columns are exact
    # zeros and stay zero through every matmul and tanh (tanh(0)=0), so the
    # result is equivalent; the real columns are sliced back out below.
    xp = jnp.pad(x.astype(jnp.float32), ((0, 0), (0, D - n_input)))
    adj = adj.astype(jnp.float32)
    wc = prepared["wc"]

    # Advisory cost estimate: arithmetic on TRUE dims, bytes on padded sizes.
    flops = (2 * n * (n_input * d1 + n * d1) +
             2 * n * (d1 * d2 + n * d2) +
             2 * n * (d2 * d3 + n * d3))
    transcendentals = n * (d1 + d2 + d3)
    bytes_accessed = 4 * (n * D + n * n + 3 * D * D + n * D)

    inputs = (xp, adj, wc)

    z_pad = pl.pallas_call(
        _fused_encoder_kernel,
        out_shape=jax.ShapeDtypeStruct((n, D), jnp.float32),
        grid=(),
        in_specs=[_full_spec(a.shape) for a in inputs],
        out_specs=_full_spec((n, D)),
        cost_estimate=pl.CostEstimate(flops=flops,
                                      transcendentals=transcendentals,
                                      bytes_accessed=bytes_accessed),
    )(*inputs)

    # Note: PyTorch's forward also computes sigmoid(z_igae @ z_igae.T) and
    # discards it; that dead work is intentionally omitted here.
    return z_pad[:, :d3]


# --------------------------- parameter init ----------------------------------

def xavier_uniform(key, shape):
    fan_in, fan_out = shape
    limit = (6.0 / (fan_in + fan_out)) ** 0.5
    return jax.random.uniform(key, shape, jnp.float32, -limit, limit)


def init_igae_encoder_params(key, gae_n_enc_1, gae_n_enc_2, gae_n_enc_3, n_input):
    ks = jax.random.split(key, 6)
    return {
        "gnn_1": {"weight":  xavier_uniform(ks[0], (n_input, gae_n_enc_1)),
                  "weight1": xavier_uniform(ks[1], (n_input, n_input))},
        "gnn_2": {"weight":  xavier_uniform(ks[2], (gae_n_enc_1, gae_n_enc_2)),
                  "weight1": xavier_uniform(ks[3], (gae_n_enc_1, gae_n_enc_1))},
        "gnn_3": {"weight":  xavier_uniform(ks[4], (gae_n_enc_2, gae_n_enc_3)),
                  "weight1": xavier_uniform(ks[5], (gae_n_enc_2, gae_n_enc_2))},
    }


# ------------------------------ reference ------------------------------------

def igae_encoder_ref(params, x, adj):
    def layer(f, p):
        x1 = 0.9 * f + 0.1 * jnp.dot(f, p["weight1"],
                                     precision=jax.lax.Precision.HIGHEST)
        support = jnp.tanh(jnp.dot(x1, p["weight"],
                                   precision=jax.lax.Precision.HIGHEST))
        return jnp.dot(adj, support, precision=jax.lax.Precision.HIGHEST)
    z = layer(x, params["gnn_1"])
    z = layer(z, params["gnn_2"])
    return layer(z, params["gnn_3"])


# --------------------------------- main ---------------------------------------

if __name__ == "__main__":
    key = jax.random.PRNGKey(0)
    k_param, k_x, k_adj = jax.random.split(key, 3)

    # small shapes consistent with the module
    n_nodes = 16
    n_input = 32
    gae_n_enc_1, gae_n_enc_2, gae_n_enc_3 = 64, 32, 16

    params = init_igae_encoder_params(k_param, gae_n_enc_1, gae_n_enc_2,
                                      gae_n_enc_3, n_input)
    prepared = prepare_igae_encoder_params(params)   # one-time weight prep

    x = jax.random.normal(k_x, (n_nodes, n_input), jnp.float32)
    # row-normalized dense adjacency (stand-in for the sparse adj in spmm)
    a = jax.random.uniform(k_adj, (n_nodes, n_nodes), jnp.float32)
    a = (a > 0.5).astype(jnp.float32) + jnp.eye(n_nodes, dtype=jnp.float32)
    adj = a / jnp.sum(a, axis=1, keepdims=True)

    z_igae = igae_encoder_forward(prepared, x, adj)
    jax.block_until_ready(z_igae)

    z_ref = igae_encoder_ref(params, x, adj)
    assert z_igae.shape == (n_nodes, gae_n_enc_3)
    # Pre-combined weights reassociate fp ops vs. the PyTorch formulation;
    # results match to ~1e-5 absolute, so keep a modest tolerance.
    assert jnp.allclose(z_igae, z_ref, atol=1e-4, rtol=1e-4)

    print("KERNEL_OK")
</pallas_src>

<mosaic_0001>
module attributes {stable_mosaic.version = 11 : i64} {
  func.func @_fused_encoder_kernel(%arg0: memref<16x128xf32, #tpu.memory_space<vmem>>, %arg1: memref<16x16xf32, #tpu.memory_space<vmem>>, %arg2: memref<3x128x128xf32, #tpu.memory_space<vmem>>, %arg3: memref<16x128xf32, #tpu.memory_space<vmem>>) attributes {dimension_semantics = [], scalar_prefetch = 0 : i64, scratch_operands = 0 : i64, tpu.core_type = #tpu.core_type<tc>} {
    %c0 = arith.constant 0 : index
    %c0_0 = arith.constant 0 : index
    %0 = vector.load %arg1[%c0, %c0_0] : memref<16x16xf32, #tpu.memory_space<vmem>>, vector<16x16xf32>
    %c0_1 = arith.constant 0 : index
    %c0_2 = arith.constant 0 : index
    %1 = vector.load %arg0[%c0_1, %c0_2] : memref<16x128xf32, #tpu.memory_space<vmem>>, vector<16x128xf32>
    %c0_3 = arith.constant 0 : index
    %c0_4 = arith.constant 0 : index
    %c0_5 = arith.constant 0 : index
    %2 = vector.load %arg2[%c0_3, %c0_4, %c0_5] : memref<3x128x128xf32, #tpu.memory_space<vmem>>, vector<1x128x128xf32>
    %3 = vector.shape_cast %2 : vector<1x128x128xf32> to vector<128x128xf32>
    %cst = arith.constant dense<0.000000e+00> : vector<16x128xf32>
    %4 = tpu.matmul %1, %3, %cst {dimension_numbers = #tpu.dot_dimension_numbers<[1], [0], [0], [1], [0, 0, 1, 1], [], []>} : vector<16x128xf32>, vector<128x128xf32>, vector<16x128xf32> -> vector<16x128xf32>
    %5 = math.tanh %4 : vector<16x128xf32>
    %cst_6 = arith.constant dense<0.000000e+00> : vector<16x128xf32>
    %6 = tpu.matmul %0, %5, %cst_6 {dimension_numbers = #tpu.dot_dimension_numbers<[1], [0], [0], [1], [0, 0, 1, 1], [], []>} : vector<16x16xf32>, vector<16x128xf32>, vector<16x128xf32> -> vector<16x128xf32>
    %c1 = arith.constant 1 : index
    %c0_7 = arith.constant 0 : index
    %c0_8 = arith.constant 0 : index
    %7 = vector.load %arg2[%c1, %c0_7, %c0_8] : memref<3x128x128xf32, #tpu.memory_space<vmem>>, vector<1x128x128xf32>
    %8 = vector.shape_cast %7 : vector<1x128x128xf32> to vector<128x128xf32>
    %cst_9 = arith.constant dense<0.000000e+00> : vector<16x128xf32>
    %9 = tpu.matmul %6, %8, %cst_9 {dimension_numbers = #tpu.dot_dimension_numbers<[1], [0], [0], [1], [0, 0, 1, 1], [], []>} : vector<16x128xf32>, vector<128x128xf32>, vector<16x128xf32> -> vector<16x128xf32>
    %10 = math.tanh %9 : vector<16x128xf32>
    %cst_10 = arith.constant dense<0.000000e+00> : vector<16x128xf32>
    %11 = tpu.matmul %0, %10, %cst_10 {dimension_numbers = #tpu.dot_dimension_numbers<[1], [0], [0], [1], [0, 0, 1, 1], [], []>} : vector<16x16xf32>, vector<16x128xf32>, vector<16x128xf32> -> vector<16x128xf32>
    %c2 = arith.constant 2 : index
    %c0_11 = arith.constant 0 : index
    %c0_12 = arith.constant 0 : index
    %12 = vector.load %arg2[%c2, %c0_11, %c0_12] : memref<3x128x128xf32, #tpu.memory_space<vmem>>, vector<1x128x128xf32>
    %13 = vector.shape_cast %12 : vector<1x128x128xf32> to vector<128x128xf32>
    %cst_13 = arith.constant dense<0.000000e+00> : vector<16x128xf32>
    %14 = tpu.matmul %11, %13, %cst_13 {dimension_numbers = #tpu.dot_dimension_numbers<[1], [0], [0], [1], [0, 0, 1, 1], [], []>} : vector<16x128xf32>, vector<128x128xf32>, vector<16x128xf32> -> vector<16x128xf32>
    %15 = math.tanh %14 : vector<16x128xf32>
    %cst_14 = arith.constant dense<0.000000e+00> : vector<16x128xf32>
    %16 = tpu.matmul %0, %15, %cst_14 {dimension_numbers = #tpu.dot_dimension_numbers<[1], [0], [0], [1], [0, 0, 1, 1], [], []>} : vector<16x16xf32>, vector<16x128xf32>, vector<16x128xf32> -> vector<16x128xf32>
    %c0_15 = arith.constant 0 : index
    %c0_16 = arith.constant 0 : index
    %17 = vector.load %arg3[%c0_15, %c0_16] : memref<16x128xf32, #tpu.memory_space<vmem>>, vector<16x128xf32>
    tpu.vector_store %arg3[%c0_15, %c0_16], %16 {strides = array<i32>} : memref<16x128xf32, #tpu.memory_space<vmem>>, vector<16x128xf32>,
    return
  }
}

</mosaic_0001>

<llo_original>
// kernel: tpu_custom_call.1
$region0: #{tpu_custom_call.1}
  #allocation0 [shape = 'u32[]', space=smem, size = 0x4, offset = 0x4, fixed_abs, tag = 'smem constant byte address 0x4 - core index']
  #allocation1 [shape = 'u32[144,128]{1,0:T(1,128)}', space=vmem, size = 0x12000, scoped, tag = 'internal scratch']
  %s0 = inlined_call_operand.hbm [shape: f32[16,128], index: 0, kind: input, shape index: {}]
  %s1 = inlined_call_operand.hbm [shape: f32[16,16], index: 1, kind: input, shape index: {}]
  %s2 = inlined_call_operand.hbm [shape: f32[3,128,128], index: 2, kind: input, shape index: {}]
  %s3 = inlined_call_operand.hbm [shape: f32[16,128], index: 3, kind: output, shape index: {}]
  %s4 = sld [smem:[#allocation0]]
  $region34: #{tpu_custom_call.1} parent=0
    _
  %s6 = ssub.s32 1, %s4
  %s7 = scalar_select 0, %s6, %s4
  $region1: #{tpu_custom_call.1} parent=0
    #allocation2 [shape = 'u8[8192]{0}', space=vmem, size = 0x2000, scoped, tag = 'input window, operand 0, single buffered']
    #allocation3 [shape = 's32[1]{0}', space=sflag, size = 0x4, scoped, tag = 'scoped memory for tpu_custom_call.1']
    #allocation4 [shape = 's32[1]{0}', space=sflag, size = 0x4, scoped, tag = 'scoped memory for tpu_custom_call.1']
    #allocation5 [shape = 'u8[8192]{0}', space=vmem, size = 0x2000, scoped, tag = 'input window, operand 1, single buffered']
    #allocation6 [shape = 's32[1]{0}', space=sflag, size = 0x4, scoped, tag = 'scoped memory for tpu_custom_call.1']
    #allocation7 [shape = 'u8[196608]{0}', space=vmem, size = 0x30000, scoped, tag = 'input window, operand 2, single buffered']
    #allocation8 [shape = 'u8[8192]{0}', space=vmem, size = 0x2000, scoped, tag = 'output window, operand 0, single buffered']
    %8 = vsyncpa [#allocation3], 0
    %9 = vsyncpa [#allocation6], 0
    %10 = vsyncpa [#allocation4], 0
    // Predicated region
    $region2: #{tpu_custom_call.1} parent=1 // pred_check
      _
    $region3: #{tpu_custom_call.1} parent=1 // pred_check_branch
      %12 = sbr.rel (0) target = $region5
    $region4: #{tpu_custom_call.1} parent=1 // pred_region
      %s14 = ssub.s32 256, 256
      %15 = vsyncadd [#allocation3], %s14
      %s16 = sshll.u32 [#allocation2], 4
      %s17 = int_to_ptr.vmem [resolvable:$true] %s16
      %22 = dma.hbm_to_vmem [thread:$0]  %s0, 256, %s17, [#allocation3], 128, 128, 8
    $region5: #{tpu_custom_call.1} parent=1 // pred_fallthru
      _
    // Predicated region
    $region6: #{tpu_custom_call.1} parent=1 // pred_check
      _
    $region7: #{tpu_custom_call.1} parent=1 // pred_check_branch
      %24 = sbr.rel (0) target = $region9
    $region8: #{tpu_custom_call.1} parent=1 // pred_region
      %s26 = ssub.s32 256, 256
      %27 = vsyncadd [#allocation6], %s26
      %s28 = sshll.u32 [#allocation5], 4
      %s29 = int_to_ptr.vmem [resolvable:$true] %s28
      %34 = dma.hbm_to_vmem [thread:$0]  %s1, 256, %s29, [#allocation6], 128, 128, 8
    $region9: #{tpu_custom_call.1} parent=1 // pred_fallthru
      _
    // Predicated region
    $region10: #{tpu_custom_call.1} parent=1 // pred_check
      _
    $region11: #{tpu_custom_call.1} parent=1 // pred_check_branch
      %36 = sbr.rel (0) target = $region13
    $region12: #{tpu_custom_call.1} parent=1 // pred_region
      %s38 = ssub.s32 6144, 6144
      %39 = vsyncadd [#allocation6], %s38
      %s40 = sshll.u32 [#allocation7], 4
      %s41 = int_to_ptr.vmem [resolvable:$true] %s40
      %46 = dma.hbm_to_vmem [thread:$0]  %s2, 6144, %s41, [#allocation6], 128, 128, 8
    $region13: #{tpu_custom_call.1} parent=1 // pred_fallthru
      _
    // Predicated region
    $region14: #{tpu_custom_call.1} parent=1 // pred_check
      _
    $region15: #{tpu_custom_call.1} parent=1 // pred_check_branch
      %48 = sbr.rel (0) target = $region17
    $region16: #{tpu_custom_call.1} parent=1 // pred_region
      %49 = dma.done [#allocation3], 256
    $region17: #{tpu_custom_call.1} parent=1 // pred_fallthru
      _
    // Predicated region
    $region18: #{tpu_custom_call.1} parent=1 // pred_check
      _
    $region19: #{tpu_custom_call.1} parent=1 // pred_check_branch
      %51 = sbr.rel (0) target = $region21
    $region20: #{tpu_custom_call.1} parent=1 // pred_region
      %52 = dma.done [#allocation6], 256
    $region21: #{tpu_custom_call.1} parent=1 // pred_fallthru
      _
    // Predicated region
    $region22: #{tpu_custom_call.1} parent=1 // pred_check
      _
    $region23: #{tpu_custom_call.1} parent=1 // pred_check_branch
      %54 = sbr.rel (0) target = $region25
    $region24: #{tpu_custom_call.1} parent=1 // pred_region
      %55 = dma.done [#allocation6], 6144
    $region25: #{tpu_custom_call.1} parent=1 // pred_fallthru
      _
    %v56 = vld [vmem:[#allocation5] sm:$0xff]
    %v57 = vld [vmem:[#allocation5 + $0x8] sm:$0xff]
    %v58 = vld [vmem:[#allocation2] sm:$0xff]
    %v59 = vld [vmem:[#allocation2 + $0x8] sm:$0xff]
    %v60 = vld [vmem:[#allocation7] sm:$0xff]
    %v61 = vld [vmem:[#allocation7 + $0x8] sm:$0xff]
    %v62 = vld [vmem:[#allocation7 + $0x10] sm:$0xff]
    %v63 = vld [vmem:[#allocation7 + $0x18] sm:$0xff]
    %v64 = vld [vmem:[#allocation7 + $0x20] sm:$0xff]
    %v65 = vld [vmem:[#allocation7 + $0x28] sm:$0xff]
    %v66 = vld [vmem:[#allocation7 + $0x30] sm:$0xff]
    %v67 = vld [vmem:[#allocation7 + $0x38] sm:$0xff]
    %v68 = vld [vmem:[#allocation7 + $0x40] sm:$0xff]
    %v69 = vld [vmem:[#allocation7 + $0x48] sm:$0xff]
    %v70 = vld [vmem:[#allocation7 + $0x50] sm:$0xff]
    %v71 = vld [vmem:[#allocation7 + $0x58] sm:$0xff]
    %v72 = vld [vmem:[#allocation7 + $0x60] sm:$0xff]
    %v73 = vld [vmem:[#allocation7 + $0x68] sm:$0xff]
    %v74 = vld [vmem:[#allocation7 + $0x70] sm:$0xff]
    %v75 = vld [vmem:[#allocation7 + $0x78] sm:$0xff]
    %76 = vmatprep.subr.mxu0 0.0
    %77 = vmatpush1.msra.mxu0 %v75
    %78 = vmatprep.subr.mxu0 0.0
    %79 = vmatpush1.msra.mxu0 %v74
    %80 = vmatprep.subr.mxu0 0.0
    %81 = vmatpush1.msra.mxu0 %v73
    %82 = vmatprep.subr.mxu0 0.0
    %83 = vmatpush1.msra.mxu0 %v72
    %84 = vmatprep.subr.mxu0 0.0
    %85 = vmatpush1.msra.mxu0 %v71
    %86 = vmatprep.subr.mxu0 0.0
    %87 = vmatpush1.msra.mxu0 %v70
    %88 = vmatprep.subr.mxu0 0.0
    %89 = vmatpush1.msra.mxu0 %v69
    %90 = vmatprep.subr.mxu0 0.0
    %91 = vmatpush1.msra.mxu0 %v68
    %92 = vmatprep.subr.mxu0 0.0
    %93 = vmatpush1.msra.mxu0 %v67
    %94 = vmatprep.subr.mxu0 0.0
    %95 = vmatpush1.msra.mxu0 %v66
    %96 = vmatprep.subr.mxu0 0.0
    %97 = vmatpush1.msra.mxu0 %v65
    %98 = vmatprep.subr.mxu0 0.0
    %99 = vmatpush1.msra.mxu0 %v64
    %100 = vmatprep.subr.mxu0 0.0
    %101 = vmatpush1.msra.mxu0 %v63
    %102 = vmatprep.subr.mxu0 0.0
    %103 = vmatpush1.msra.mxu0 %v62
    %104 = vmatprep.subr.mxu0 0.0
    %105 = vmatpush1.msra.mxu0 %v61
    %106 = vmatprep.subr.mxu0 0.0
    %107 = vmatpush1.msra.mxu0 %v60
    %108 = vmatprep.subr.mxu0 0.0
    %109 = vmatpush2.msra.mxu0 0.0
    %110 = vmatprep.subr.mxu0 0.0
    %111 = vmatpush2.msra.mxu0 0.0
    %112 = vmatprep.subr.mxu0 0.0
    %113 = vmatpush2.msra.mxu0 0.0
    %114 = vmatprep.subr.mxu0 0.0
    %115 = vmatpush2.msra.mxu0 0.0
    %116 = vmatprep.subr.mxu0 0.0
    %117 = vmatpush2.msra.mxu0 0.0
    %118 = vmatprep.subr.mxu0 0.0
    %119 = vmatpush2.msra.mxu0 0.0
    %120 = vmatprep.subr.mxu0 0.0
    %121 = vmatpush2.msra.mxu0 0.0
    %122 = vmatprep.subr.mxu0 0.0
    %123 = vmatpush2.msra.mxu0 0.0
    %124 = vmatprep.subr.mxu0 0.0
    %125 = vmatpush2.msra.mxu0 0.0
    %126 = vmatprep.subr.mxu0 0.0
    %127 = vmatpush2.msra.mxu0 0.0
    %128 = vmatprep.subr.mxu0 0.0
    %129 = vmatpush2.msra.mxu0 0.0
    %130 = vmatprep.subr.mxu0 0.0
    %131 = vmatpush2.msra.mxu0 0.0
    %132 = vmatprep.subr.mxu0 0.0
    %133 = vmatpush2.msra.mxu0 0.0
    %134 = vmatprep.subr.mxu0 0.0
    %135 = vmatpush2.msra.mxu0 0.0
    %136 = vmatprep.subr.mxu0 0.0
    %137 = vmatpush2.msra.mxu0 0.0
    %138 = vmatprep.subr.mxu0 0.0
    %139 = vmatpush2.msra.mxu0 0.0
    %140 = vmatprep.mubr.f32.mxu0 0.0
    %141 = vmatmul.mubr.f32.gmra.mxu0 %v58
    %v142 = vpop.f32.mrf.mxu0
    %v143 = vadd.f32 0.0, %v142
    %v144 = vpop.f32.mrf.mxu0
    %145 = vmatprep.mubr.f32.mxu0 0.0
    %146 = vmatmul.mubr.f32.gmra.mxu0 %v59
    %v147 = vpop.f32.mrf.mxu0
    %v148 = vadd.f32 0.0, %v147
    %v149 = vpop.f32.mrf.mxu0
    %150 = vdwg.mxu0
    %v151 = vtanh.pop %v143
    %v152 = vtanh.pop %v148
    %vm153 = vcmask 130048
    %v155 = vsel %vm153, %v56, 0
    %v158 = vsel %vm153, %v57, 0
    %160 = vmatprep.subr.mxu0 0.0
    %161 = vmatpush1.msra.mxu0 0.0
    %162 = vmatprep.subr.mxu0 0.0
    %163 = vmatpush1.msra.mxu0 0.0
    %164 = vmatprep.subr.mxu0 0.0
    %165 = vmatpush1.msra.mxu0 0.0
    %166 = vmatprep.subr.mxu0 0.0
    %167 = vmatpush1.msra.mxu0 0.0
    %168 = vmatprep.subr.mxu0 0.0
    %169 = vmatpush1.msra.mxu0 0.0
    %170 = vmatprep.subr.mxu0 0.0
    %171 = vmatpush1.msra.mxu0 0.0
    %172 = vmatprep.subr.mxu0 0.0
    %173 = vmatpush1.msra.mxu0 0.0
    %174 = vmatprep.subr.mxu0 0.0
    %175 = vmatpush1.msra.mxu0 0.0
    %176 = vmatprep.subr.mxu0 0.0
    %177 = vmatpush1.msra.mxu0 0.0
    %178 = vmatprep.subr.mxu0 0.0
    %179 = vmatpush1.msra.mxu0 0.0
    %180 = vmatprep.subr.mxu0 0.0
    %181 = vmatpush1.msra.mxu0 0.0
    %182 = vmatprep.subr.mxu0 0.0
    %183 = vmatpush1.msra.mxu0 0.0
    %184 = vmatprep.subr.mxu0 0.0
    %185 = vmatpush1.msra.mxu0 0.0
    %186 = vmatprep.subr.mxu0 0.0
    %187 = vmatpush1.msra.mxu0 0.0
    %188 = vmatprep.subr.mxu0 0.0
    %189 = vmatpush1.msra.mxu0 %v152
    %190 = vmatprep.subr.mxu0 0.0
    %191 = vmatpush1.msra.mxu0 %v151
    %192 = vmatprep.subr.mxu0 0.0
    %193 = vmatpush2.msra.mxu0 0.0
    %194 = vmatprep.subr.mxu0 0.0
    %195 = vmatpush2.msra.mxu0 0.0
    %196 = vmatprep.subr.mxu0 0.0
    %197 = vmatpush2.msra.mxu0 0.0
    %198 = vmatprep.subr.mxu0 0.0
    %199 = vmatpush2.msra.mxu0 0.0
    %200 = vmatprep.subr.mxu0 0.0
    %201 = vmatpush2.msra.mxu0 0.0
    %202 = vmatprep.subr.mxu0 0.0
    %203 = vmatpush2.msra.mxu0 0.0
    %204 = vmatprep.subr.mxu0 0.0
    %205 = vmatpush2.msra.mxu0 0.0
    %206 = vmatprep.subr.mxu0 0.0
    %207 = vmatpush2.msra.mxu0 0.0
    %208 = vmatprep.subr.mxu0 0.0
    %209 = vmatpush2.msra.mxu0 0.0
    %210 = vmatprep.subr.mxu0 0.0
    %211 = vmatpush2.msra.mxu0 0.0
    %212 = vmatprep.subr.mxu0 0.0
    %213 = vmatpush2.msra.mxu0 0.0
    %214 = vmatprep.subr.mxu0 0.0
    %215 = vmatpush2.msra.mxu0 0.0
    %216 = vmatprep.subr.mxu0 0.0
    %217 = vmatpush2.msra.mxu0 0.0
    %218 = vmatprep.subr.mxu0 0.0
    %219 = vmatpush2.msra.mxu0 0.0
    %220 = vmatprep.subr.mxu0 0.0
    %221 = vmatpush2.msra.mxu0 0.0
    %222 = vmatprep.subr.mxu0 0.0
    %223 = vmatpush2.msra.mxu0 0.0
    %224 = vmatprep.mubr.f32.mxu0 0.0
    %225 = vmatmul.mubr.f32.gmra.mxu0 %v155
    %v226 = vpop.f32.mrf.mxu0
    %v227 = vadd.f32 0.0, %v226
    %v228 = vpop.f32.mrf.mxu0
    %229 = vmatprep.mubr.f32.mxu0 0.0
    %230 = vmatmul.mubr.f32.gmra.mxu0 %v158
    %v231 = vpop.f32.mrf.mxu0
    %v232 = vadd.f32 0.0, %v231
    %v233 = vpop.f32.mrf.mxu0
    %234 = vdwg.mxu0
    %s235 = scalar_lea.vmem [#allocation7], 128
    %v236 = vld [vmem:[%s235] sm:$0xff]
    %v237 = vld [vmem:[%s235 + $0x8] sm:$0xff]
    %v238 = vld [vmem:[%s235 + $0x10] sm:$0xff]
    %v239 = vld [vmem:[%s235 + $0x18] sm:$0xff]
    %v240 = vld [vmem:[%s235 + $0x20] sm:$0xff]
    %v241 = vld [vmem:[%s235 + $0x28] sm:$0xff]
    %v242 = vld [vmem:[%s235 + $0x30] sm:$0xff]
    %v243 = vld [vmem:[%s235 + $0x38] sm:$0xff]
    %v244 = vld [vmem:[%s235 + $0x40] sm:$0xff]
    %v245 = vld [vmem:[%s235 + $0x48] sm:$0xff]
    %v246 = vld [vmem:[%s235 + $0x50] sm:$0xff]
    %v247 = vld [vmem:[%s235 + $0x58] sm:$0xff]
    %v248 = vld [vmem:[%s235 + $0x60] sm:$0xff]
    %v249 = vld [vmem:[%s235 + $0x68] sm:$0xff]
    %v250 = vld [vmem:[%s235 + $0x70] sm:$0xff]
    %v251 = vld [vmem:[%s235 + $0x78] sm:$0xff]
    %252 = vmatprep.subr.mxu0 0.0
    %253 = vmatpush1.msra.mxu0 %v251
    %254 = vmatprep.subr.mxu0 0.0
    %255 = vmatpush1.msra.mxu0 %v250
    %256 = vmatprep.subr.mxu0 0.0
    %257 = vmatpush1.msra.mxu0 %v249
    %258 = vmatprep.subr.mxu0 0.0
    %259 = vmatpush1.msra.mxu0 %v248
    %260 = vmatprep.subr.mxu0 0.0
    %261 = vmatpush1.msra.mxu0 %v247
    %262 = vmatprep.subr.mxu0 0.0
    %263 = vmatpush1.msra.mxu0 %v246
    %264 = vmatprep.subr.mxu0 0.0
    %265 = vmatpush1.msra.mxu0 %v245
    %266 = vmatprep.subr.mxu0 0.0
    %267 = vmatpush1.msra.mxu0 %v244
    %268 = vmatprep.subr.mxu0 0.0
    %269 = vmatpush1.msra.mxu0 %v243
    %270 = vmatprep.subr.mxu0 0.0
    %271 = vmatpush1.msra.mxu0 %v242
    %272 = vmatprep.subr.mxu0 0.0
    %273 = vmatpush1.msra.mxu0 %v241
    %274 = vmatprep.subr.mxu0 0.0
    %275 = vmatpush1.msra.mxu0 %v240
    %276 = vmatprep.subr.mxu0 0.0
    %277 = vmatpush1.msra.mxu0 %v239
    %278 = vmatprep.subr.mxu0 0.0
    %279 = vmatpush1.msra.mxu0 %v238
    %280 = vmatprep.subr.mxu0 0.0
    %281 = vmatpush1.msra.mxu0 %v237
    %282 = vmatprep.subr.mxu0 0.0
    %283 = vmatpush1.msra.mxu0 %v236
    %284 = vmatprep.subr.mxu0 0.0
    %285 = vmatpush2.msra.mxu0 0.0
    %286 = vmatprep.subr.mxu0 0.0
    %287 = vmatpush2.msra.mxu0 0.0
    %288 = vmatprep.subr.mxu0 0.0
    %289 = vmatpush2.msra.mxu0 0.0
    %290 = vmatprep.subr.mxu0 0.0
    %291 = vmatpush2.msra.mxu0 0.0
    %292 = vmatprep.subr.mxu0 0.0
    %293 = vmatpush2.msra.mxu0 0.0
    %294 = vmatprep.subr.mxu0 0.0
    %295 = vmatpush2.msra.mxu0 0.0
    %296 = vmatprep.subr.mxu0 0.0
    %297 = vmatpush2.msra.mxu0 0.0
    %298 = vmatprep.subr.mxu0 0.0
    %299 = vmatpush2.msra.mxu0 0.0
    %300 = vmatprep.subr.mxu0 0.0
    %301 = vmatpush2.msra.mxu0 0.0
    %302 = vmatprep.subr.mxu0 0.0
    %303 = vmatpush2.msra.mxu0 0.0
    %304 = vmatprep.subr.mxu0 0.0
    %305 = vmatpush2.msra.mxu0 0.0
    %306 = vmatprep.subr.mxu0 0.0
    %307 = vmatpush2.msra.mxu0 0.0
    %308 = vmatprep.subr.mxu0 0.0
    %309 = vmatpush2.msra.mxu0 0.0
    %310 = vmatprep.subr.mxu0 0.0
    %311 = vmatpush2.msra.mxu0 0.0
    %312 = vmatprep.subr.mxu0 0.0
    %313 = vmatpush2.msra.mxu0 0.0
    %314 = vmatprep.subr.mxu0 0.0
    %315 = vmatpush2.msra.mxu0 0.0
    %316 = vmatprep.mubr.f32.mxu0 0.0
    %317 = vmatmul.mubr.f32.gmra.mxu0 %v227
    %v318 = vpop.f32.mrf.mxu0
    %v319 = vadd.f32 0.0, %v318
    %v320 = vpop.f32.mrf.mxu0
    %321 = vmatprep.mubr.f32.mxu0 0.0
    %322 = vmatmul.mubr.f32.gmra.mxu0 %v232
    %v323 = vpop.f32.mrf.mxu0
    %v324 = vadd.f32 0.0, %v323
    %v325 = vpop.f32.mrf.mxu0
    %326 = vdwg.mxu0
    %v327 = vtanh.pop %v319
    %v328 = vtanh.pop %v324
    %329 = vmatprep.subr.mxu0 0.0
    %330 = vmatpush1.msra.mxu0 0.0
    %331 = vmatprep.subr.mxu0 0.0
    %332 = vmatpush1.msra.mxu0 0.0
    %333 = vmatprep.subr.mxu0 0.0
    %334 = vmatpush1.msra.mxu0 0.0
    %335 = vmatprep.subr.mxu0 0.0
    %336 = vmatpush1.msra.mxu0 0.0
    %337 = vmatprep.subr.mxu0 0.0
    %338 = vmatpush1.msra.mxu0 0.0
    %339 = vmatprep.subr.mxu0 0.0
    %340 = vmatpush1.msra.mxu0 0.0
    %341 = vmatprep.subr.mxu0 0.0
    %342 = vmatpush1.msra.mxu0 0.0
    %343 = vmatprep.subr.mxu0 0.0
    %344 = vmatpush1.msra.mxu0 0.0
    %345 = vmatprep.subr.mxu0 0.0
    %346 = vmatpush1.msra.mxu0 0.0
    %347 = vmatprep.subr.mxu0 0.0
    %348 = vmatpush1.msra.mxu0 0.0
    %349 = vmatprep.subr.mxu0 0.0
    %350 = vmatpush1.msra.mxu0 0.0
    %351 = vmatprep.subr.mxu0 0.0
    %352 = vmatpush1.msra.mxu0 0.0
    %353 = vmatprep.subr.mxu0 0.0
    %354 = vmatpush1.msra.mxu0 0.0
    %355 = vmatprep.subr.mxu0 0.0
    %356 = vmatpush1.msra.mxu0 0.0
    %357 = vmatprep.subr.mxu0 0.0
    %358 = vmatpush1.msra.mxu0 %v328
    %359 = vmatprep.subr.mxu0 0.0
    %360 = vmatpush1.msra.mxu0 %v327
    %361 = vmatprep.subr.mxu0 0.0
    %362 = vmatpush2.msra.mxu0 0.0
    %363 = vmatprep.subr.mxu0 0.0
    %364 = vmatpush2.msra.mxu0 0.0
    %365 = vmatprep.subr.mxu0 0.0
    %366 = vmatpush2.msra.mxu0 0.0
    %367 = vmatprep.subr.mxu0 0.0
    %368 = vmatpush2.msra.mxu0 0.0
    %369 = vmatprep.subr.mxu0 0.0
    %370 = vmatpush2.msra.mxu0 0.0
    %371 = vmatprep.subr.mxu0 0.0
    %372 = vmatpush2.msra.mxu0 0.0
    %373 = vmatprep.subr.mxu0 0.0
    %374 = vmatpush2.msra.mxu0 0.0
    %375 = vmatprep.subr.mxu0 0.0
    %376 = vmatpush2.msra.mxu0 0.0
    %377 = vmatprep.subr.mxu0 0.0
    %378 = vmatpush2.msra.mxu0 0.0
    %379 = vmatprep.subr.mxu0 0.0
    %380 = vmatpush2.msra.mxu0 0.0
    %381 = vmatprep.subr.mxu0 0.0
    %382 = vmatpush2.msra.mxu0 0.0
    %383 = vmatprep.subr.mxu0 0.0
    %384 = vmatpush2.msra.mxu0 0.0
    %385 = vmatprep.subr.mxu0 0.0
    %386 = vmatpush2.msra.mxu0 0.0
    %387 = vmatprep.subr.mxu0 0.0
    %388 = vmatpush2.msra.mxu0 0.0
    %389 = vmatprep.subr.mxu0 0.0
    %390 = vmatpush2.msra.mxu0 0.0
    %391 = vmatprep.subr.mxu0 0.0
    %392 = vmatpush2.msra.mxu0 0.0
    %393 = vmatprep.mubr.f32.mxu0 0.0
    %394 = vmatmul.mubr.f32.gmra.mxu0 %v155
    %v395 = vpop.f32.mrf.mxu0
    %v396 = vadd.f32 0.0, %v395
    %v397 = vpop.f32.mrf.mxu0
    %398 = vmatprep.mubr.f32.mxu0 0.0
    %399 = vmatmul.mubr.f32.gmra.mxu0 %v158
    %v400 = vpop.f32.mrf.mxu0
    %v401 = vadd.f32 0.0, %v400
    %v402 = vpop.f32.mrf.mxu0
    %403 = vdwg.mxu0
    %s404 = scalar_lea.vmem [#allocation7], 256
    %v405 = vld [vmem:[%s404] sm:$0xff]
    %v406 = vld [vmem:[%s404 + $0x8] sm:$0xff]
    %v407 = vld [vmem:[%s404 + $0x10] sm:$0xff]
    %v408 = vld [vmem:[%s404 + $0x18] sm:$0xff]
    %v409 = vld [vmem:[%s404 + $0x20] sm:$0xff]
    %v410 = vld [vmem:[%s404 + $0x28] sm:$0xff]
    %v411 = vld [vmem:[%s404 + $0x30] sm:$0xff]
    %v412 = vld [vmem:[%s404 + $0x38] sm:$0xff]
    %v413 = vld [vmem:[%s404 + $0x40] sm:$0xff]
    %v414 = vld [vmem:[%s404 + $0x48] sm:$0xff]
    %v415 = vld [vmem:[%s404 + $0x50] sm:$0xff]
    %v416 = vld [vmem:[%s404 + $0x58] sm:$0xff]
    %v417 = vld [vmem:[%s404 + $0x60] sm:$0xff]
    %v418 = vld [vmem:[%s404 + $0x68] sm:$0xff]
    %v419 = vld [vmem:[%s404 + $0x70] sm:$0xff]
    %v420 = vld [vmem:[%s404 + $0x78] sm:$0xff]
    %421 = vmatprep.subr.mxu0 0.0
    %422 = vmatpush1.msra.mxu0 %v420
    %423 = vmatprep.subr.mxu0 0.0
    %424 = vmatpush1.msra.mxu0 %v419
    %425 = vmatprep.subr.mxu0 0.0
    %426 = vmatpush1.msra.mxu0 %v418
    %427 = vmatprep.subr.mxu0 0.0
    %428 = vmatpush1.msra.mxu0 %v417
    %429 = vmatprep.subr.mxu0 0.0
    %430 = vmatpush1.msra.mxu0 %v416
    %431 = vmatprep.subr.mxu0 0.0
    %432 = vmatpush1.msra.mxu0 %v415
    %433 = vmatprep.subr.mxu0 0.0
    %434 = vmatpush1.msra.mxu0 %v414
    %435 = vmatprep.subr.mxu0 0.0
    %436 = vmatpush1.msra.mxu0 %v413
    %437 = vmatprep.subr.mxu0 0.0
    %438 = vmatpush1.msra.mxu0 %v412
    %439 = vmatprep.subr.mxu0 0.0
    %440 = vmatpush1.msra.mxu0 %v411
    %441 = vmatprep.subr.mxu0 0.0
    %442 = vmatpush1.msra.mxu0 %v410
    %443 = vmatprep.subr.mxu0 0.0
    %444 = vmatpush1.msra.mxu0 %v409
    %445 = vmatprep.subr.mxu0 0.0
    %446 = vmatpush1.msra.mxu0 %v408
    %447 = vmatprep.subr.mxu0 0.0
    %448 = vmatpush1.msra.mxu0 %v407
    %449 = vmatprep.subr.mxu0 0.0
    %450 = vmatpush1.msra.mxu0 %v406
    %451 = vmatprep.subr.mxu0 0.0
    %452 = vmatpush1.msra.mxu0 %v405
    %453 = vmatprep.subr.mxu0 0.0
    %454 = vmatpush2.msra.mxu0 0.0
    %455 = vmatprep.subr.mxu0 0.0
    %456 = vmatpush2.msra.mxu0 0.0
    %457 = vmatprep.subr.mxu0 0.0
    %458 = vmatpush2.msra.mxu0 0.0
    %459 = vmatprep.subr.mxu0 0.0
    %460 = vmatpush2.msra.mxu0 0.0
    %461 = vmatprep.subr.mxu0 0.0
    %462 = vmatpush2.msra.mxu0 0.0
    %463 = vmatprep.subr.mxu0 0.0
    %464 = vmatpush2.msra.mxu0 0.0
    %465 = vmatprep.subr.mxu0 0.0
    %466 = vmatpush2.msra.mxu0 0.0
    %467 = vmatprep.subr.mxu0 0.0
    %468 = vmatpush2.msra.mxu0 0.0
    %469 = vmatprep.subr.mxu0 0.0
    %470 = vmatpush2.msra.mxu0 0.0
    %471 = vmatprep.subr.mxu0 0.0
    %472 = vmatpush2.msra.mxu0 0.0
    %473 = vmatprep.subr.mxu0 0.0
    %474 = vmatpush2.msra.mxu0 0.0
    %475 = vmatprep.subr.mxu0 0.0
    %476 = vmatpush2.msra.mxu0 0.0
    %477 = vmatprep.subr.mxu0 0.0
    %478 = vmatpush2.msra.mxu0 0.0
    %479 = vmatprep.subr.mxu0 0.0
    %480 = vmatpush2.msra.mxu0 0.0
    %481 = vmatprep.subr.mxu0 0.0
    %482 = vmatpush2.msra.mxu0 0.0
    %483 = vmatprep.subr.mxu0 0.0
    %484 = vmatpush2.msra.mxu0 0.0
    %485 = vmatprep.mubr.f32.mxu0 0.0
    %486 = vmatmul.mubr.f32.gmra.mxu0 %v396
    %v487 = vpop.f32.mrf.mxu0
    %v488 = vadd.f32 0.0, %v487
    %v489 = vpop.f32.mrf.mxu0
    %490 = vmatprep.mubr.f32.mxu0 0.0
    %491 = vmatmul.mubr.f32.gmra.mxu0 %v401
    %v492 = vpop.f32.mrf.mxu0
    %v493 = vadd.f32 0.0, %v492
    %v494 = vpop.f32.mrf.mxu0
    %495 = vdwg.mxu0
    %v496 = vtanh.pop %v488
    %v497 = vtanh.pop %v493
    %498 = vmatprep.subr.mxu0 0.0
    %499 = vmatpush1.msra.mxu0 0.0
    %500 = vmatprep.subr.mxu0 0.0
    %501 = vmatpush1.msra.mxu0 0.0
    %502 = vmatprep.subr.mxu0 0.0
    %503 = vmatpush1.msra.mxu0 0.0
    %504 = vmatprep.subr.mxu0 0.0
    %505 = vmatpush1.msra.mxu0 0.0
    %506 = vmatprep.subr.mxu0 0.0
    %507 = vmatpush1.msra.mxu0 0.0
    %508 = vmatprep.subr.mxu0 0.0
    %509 = vmatpush1.msra.mxu0 0.0
    %510 = vmatprep.subr.mxu0 0.0
    %511 = vmatpush1.msra.mxu0 0.0
    %512 = vmatprep.subr.mxu0 0.0
    %513 = vmatpush1.msra.mxu0 0.0
    %514 = vmatprep.subr.mxu0 0.0
    %515 = vmatpush1.msra.mxu0 0.0
    %516 = vmatprep.subr.mxu0 0.0
    %517 = vmatpush1.msra.mxu0 0.0
    %518 = vmatprep.subr.mxu0 0.0
    %519 = vmatpush1.msra.mxu0 0.0
    %520 = vmatprep.subr.mxu0 0.0
    %521 = vmatpush1.msra.mxu0 0.0
    %522 = vmatprep.subr.mxu0 0.0
    %523 = vmatpush1.msra.mxu0 0.0
    %524 = vmatprep.subr.mxu0 0.0
    %525 = vmatpush1.msra.mxu0 0.0
    %526 = vmatprep.subr.mxu0 0.0
    %527 = vmatpush1.msra.mxu0 %v497
    %528 = vmatprep.subr.mxu0 0.0
    %529 = vmatpush1.msra.mxu0 %v496
    %530 = vmatprep.subr.mxu0 0.0
    %531 = vmatpush2.msra.mxu0 0.0
    %532 = vmatprep.subr.mxu0 0.0
    %533 = vmatpush2.msra.mxu0 0.0
    %534 = vmatprep.subr.mxu0 0.0
    %535 = vmatpush2.msra.mxu0 0.0
    %536 = vmatprep.subr.mxu0 0.0
    %537 = vmatpush2.msra.mxu0 0.0
    %538 = vmatprep.subr.mxu0 0.0
    %539 = vmatpush2.msra.mxu0 0.0
    %540 = vmatprep.subr.mxu0 0.0
    %541 = vmatpush2.msra.mxu0 0.0
    %542 = vmatprep.subr.mxu0 0.0
    %543 = vmatpush2.msra.mxu0 0.0
    %544 = vmatprep.subr.mxu0 0.0
    %545 = vmatpush2.msra.mxu0 0.0
    %546 = vmatprep.subr.mxu0 0.0
    %547 = vmatpush2.msra.mxu0 0.0
    %548 = vmatprep.subr.mxu0 0.0
    %549 = vmatpush2.msra.mxu0 0.0
    %550 = vmatprep.subr.mxu0 0.0
    %551 = vmatpush2.msra.mxu0 0.0
    %552 = vmatprep.subr.mxu0 0.0
    %553 = vmatpush2.msra.mxu0 0.0
    %554 = vmatprep.subr.mxu0 0.0
    %555 = vmatpush2.msra.mxu0 0.0
    %556 = vmatprep.subr.mxu0 0.0
    %557 = vmatpush2.msra.mxu0 0.0
    %558 = vmatprep.subr.mxu0 0.0
    %559 = vmatpush2.msra.mxu0 0.0
    %560 = vmatprep.subr.mxu0 0.0
    %561 = vmatpush2.msra.mxu0 0.0
    %562 = vmatprep.mubr.f32.mxu0 0.0
    %563 = vmatmul.mubr.f32.gmra.mxu0 %v155
    %v564 = vpop.f32.mrf.mxu0
    %v565 = vadd.f32 0.0, %v564
    %v566 = vpop.f32.mrf.mxu0
    %567 = vmatprep.mubr.f32.mxu0 0.0
    %568 = vmatmul.mubr.f32.gmra.mxu0 %v158
    %v569 = vpop.f32.mrf.mxu0
    %v570 = vadd.f32 0.0, %v569
    %v571 = vpop.f32.mrf.mxu0
    %572 = vdwg.mxu0
    %573 = vst [vmem:[#allocation8] sm:$0xff] %v565
    %574 = vst [vmem:[#allocation8 + $0x8] sm:$0xff] %v570
    // Predicated region
    $region26: #{tpu_custom_call.1} parent=1 // pred_check
      _
    $region27: #{tpu_custom_call.1} parent=1 // pred_check_branch
      %576 = sbr.rel (0) target = $region29
    $region28: #{tpu_custom_call.1} parent=1 // pred_region
      %s578 = ssub.s32 256, 256
      %579 = vsyncadd [#allocation4], %s578
      %s580 = sshll.u32 [#allocation8], 4
      %s581 = int_to_ptr.vmem [resolvable:$true] %s580
      %586 = dma.vmem_to_hbm [thread:$0]  %s581, 256, %s3, [#allocation4], 128, 128, 8
    $region29: #{tpu_custom_call.1} parent=1 // pred_fallthru
      _
    // Predicated region
    $region30: #{tpu_custom_call.1} parent=1 // pred_check
      _
    $region31: #{tpu_custom_call.1} parent=1 // pred_check_branch
      %588 = sbr.rel (0) target = $region33
    $region32: #{tpu_custom_call.1} parent=1 // pred_region
      %589 = dma.done [#allocation4], 256
    $region33: #{tpu_custom_call.1} parent=1 // pred_fallthru
      _
    %590 = vsyncpa [#allocation3], 1
    %591 = vsyncpa [#allocation6], 1
    %592 = vsyncpa [#allocation4], 1

</llo_original>
